<compile_context>
chip_gen: v5e
topology: v5e:2x2
jax: 0.10.0
libtpu: 0.0.40
codegen_flags: <defaults>
</compile_context>

<pallas_src>
import jax
import jax.numpy as jnp
from jax.experimental import pallas as pl
from jax.experimental.pallas import tpu as pltpu


def _make_dino_kernel(tm, batch, ragged):
    """Kernel for one (TM, F) batch tile: writes per-tile loss / column-sum partials."""

    def kernel(scalars_ref, pred_ref, target_ref, c_ref, loss_ref, colsum_ref):
        inv_tmp_s = scalars_ref[0]
        inv_tmp_t = scalars_ref[1]

        # --- student branch: stable log-softmax pieces (never materialized) ---
        p = pred_ref[...].astype(jnp.float32) * inv_tmp_s
        p_max = jnp.max(p, axis=-1, keepdims=True)                 # (TM, 1)
        p_shift = p - p_max                                        # (TM, F)
        p_sum = jnp.sum(jnp.exp(p_shift), axis=-1, keepdims=True)  # (TM, 1)

        # --- teacher branch: softmax((target - C) / tmp_t) ---
        t = (target_ref[...].astype(jnp.float32) - c_ref[...]) * inv_tmp_t
        t_max = jnp.max(t, axis=-1, keepdims=True)                 # (TM, 1)
        t_exp = jnp.exp(t - t_max)                                 # (TM, F)
        t_sum = jnp.sum(t_exp, axis=-1, keepdims=True)             # (TM, 1)
        # Exact reciprocal: this feeds the persistent center update and the loss;
        # the approx EUP reciprocal's bias was the correctness failure.
        inv_t_sum = 1.0 / t_sum                                    # (TM, 1)

        # --- fused cross-entropy per row ---
        # -(t_sm * (p_shift - log(p_sum))).sum(-1)
        #   = log(p_sum) - inv_t_sum * (t_exp * p_shift).sum(-1)
        ce_dot = jnp.sum(t_exp * p_shift, axis=-1, keepdims=True)  # (TM, 1)
        per_row = jnp.log(p_sum) - inv_t_sum * ce_dot              # (TM, 1)

        target_sm = t_exp * inv_t_sum                              # (TM, F)

        if ragged:
            # Mask rows past the true batch (garbage/NaN-safe via select).
            i = pl.program_id(0)
            row = i * tm + jax.lax.broadcasted_iota(jnp.int32, (tm, 1), 0)
            valid = row < batch
            per_row = jnp.where(valid, per_row, 0.0)
            target_sm = jnp.where(valid, target_sm, 0.0)

        # Per-tile partial outputs (combined in the wrapper).
        loss_ref[...] = jnp.sum(per_row, axis=0, keepdims=True)[None]      # (1,1,1)
        colsum_ref[...] = jnp.sum(target_sm, axis=0, keepdims=True)[None]  # (1,1,F)

    return kernel


def _vmem_limit_bytes():
    """Half the physical VMEM, capped at 64 MiB (v5e/v6e: 64 MiB, v7x: 32 MiB)."""
    try:
        cap = pltpu.get_tpu_info().vmem_capacity_bytes
    except Exception:
        cap = 64 << 20
    return int(min(cap // 2, 64 << 20))


def _choose_tm(B, F, in_itemsize, vmem_limit):
    """Largest batch tile whose streamed inputs AND f32 intermediates fit the budget.

    Per batch row we hold: 2 inputs x 2 pipeline buffers (input dtype) plus
    ~5 live (TM, F) f32 intermediates inside the kernel body.
    """
    budget = int(0.6 * vmem_limit)
    bytes_per_row = F * (2 * 2 * in_itemsize + 5 * 4)
    tm = budget // max(1, bytes_per_row)
    tm = max(8, (tm // 8) * 8)
    tm = min(tm, 1024)
    if tm >= B:
        return B  # single full block; full-extent dims are always legal
    return tm     # ragged last tile handled by cdiv grid + in-kernel row mask


def dino_loss_forward(pred, target, C, tmp_s_arr, tmp_t_arr, epoch,
                      C_mom=0.9, tm=None):
    """Returns (loss_scalar, new_C). Mirrors DINOLoss.forward (incl. update_C)."""
    B, F = pred.shape
    tmp_s = tmp_s_arr[epoch].astype(jnp.float32)
    tmp_t = tmp_t_arr[epoch].astype(jnp.float32)
    # Precompute reciprocals once so the kernel only multiplies.
    scalars = jnp.stack([1.0 / tmp_s, 1.0 / tmp_t]).astype(jnp.float32)

    vmem_limit = _vmem_limit_bytes()
    if tm is None:
        tm = _choose_tm(B, F, jnp.dtype(pred.dtype).itemsize, vmem_limit)
    tm = min(tm, B)
    ntiles = pl.cdiv(B, tm)
    ragged = (B % tm) != 0

    loss_part, colsum_part = pl.pallas_call(
        _make_dino_kernel(tm, B, ragged),
        grid=(ntiles,),
        out_shape=(
            jax.ShapeDtypeStruct((ntiles, 1, 1), jnp.float32),   # per-tile loss sum
            jax.ShapeDtypeStruct((ntiles, 1, F), jnp.float32),   # per-tile column sum
        ),
        in_specs=[
            pl.BlockSpec(memory_space=pltpu.MemorySpace.SMEM),   # scalars
            pl.BlockSpec((tm, F), lambda i: (i, 0)),             # pred tile (streamed)
            pl.BlockSpec((tm, F), lambda i: (i, 0)),             # target tile (streamed)
            pl.BlockSpec((1, F), lambda i: (0, 0)),              # C (resident)
        ],
        out_specs=(
            pl.BlockSpec((1, 1, 1), lambda i: (i, 0, 0)),
            pl.BlockSpec((1, 1, F), lambda i: (i, 0, 0)),
        ),
        compiler_params=pltpu.CompilerParams(
            # Single "parallel" axis -> megacore shards batch tiles on v7x.
            dimension_semantics=("parallel",),
            vmem_limit_bytes=vmem_limit,
        ),
    )(scalars, pred, target, C)

    # Tiny combine (moved out of the kernel so the grid axis can be parallel).
    inv_b = jnp.float32(1.0 / B)
    loss = jnp.sum(loss_part) * inv_b
    col_mean = jnp.sum(colsum_part, axis=0) * inv_b              # (1, F)
    new_C = C_mom * C + (1.0 - C_mom) * col_mean
    return loss, new_C


def _reference(pred, target, C, tmp_s, tmp_t, C_mom):
    p = jax.nn.softmax(pred.astype(jnp.float32) / tmp_s, axis=-1)
    t = jax.nn.softmax((target.astype(jnp.float32) - C) / tmp_t, axis=-1)
    new_c = C_mom * C + (1 - C_mom) * t.mean(0, keepdims=True)
    loss = -(t * jnp.log(p)).sum(-1).mean()
    return loss, new_c


if __name__ == "__main__":
    # DINOLoss(num_epochs=40, num_features=128)
    num_epochs = 40
    num_features = 128
    C_mom = 0.9
    epoch = 5

    # deterministic "parameter"/state init matching __init__
    tmp_s_arr = jnp.ones((num_epochs,), jnp.float32) * 0.1
    tmp_t_arr = jnp.concatenate(
        [jnp.linspace(0.04, 0.07, 30, dtype=jnp.float32),
         jnp.ones((num_epochs - 30,), jnp.float32) * 0.07])
    C = jnp.zeros((1, num_features), jnp.float32)

    key = jax.random.PRNGKey(0)
    k1, k2, k3, k4 = jax.random.split(key, 4)

    # Case 1: B divisible by tm (tm=8 forces a 2-step grid -> partials path).
    B1 = 16
    pred1 = jax.random.normal(k1, (B1, num_features), jnp.float32)
    tgt1 = jax.random.normal(k2, (B1, num_features), jnp.float32)
    loss1, newC1 = dino_loss_forward(pred1, tgt1, C, tmp_s_arr, tmp_t_arr,
                                     epoch, C_mom, tm=8)
    loss1 = jax.block_until_ready(loss1)
    newC1 = jax.block_until_ready(newC1)

    # NaN check (the torch module raises on NaN loss)
    if bool(jnp.isnan(loss1)):
        raise ValueError("NaN Loss after loss calculation, Exiting Training")

    ref_loss1, ref_C1 = _reference(pred1, tgt1, C, tmp_s_arr[epoch],
                                   tmp_t_arr[epoch], C_mom)
    assert jnp.allclose(loss1, ref_loss1, rtol=1e-5, atol=1e-5), (loss1, ref_loss1)
    assert jnp.allclose(newC1, ref_C1, rtol=1e-5, atol=1e-5), (newC1, ref_C1)

    # Case 2: ragged batch (B not a multiple of tm) -> exercises the masked last tile.
    B2 = 12
    pred2 = jax.random.normal(k3, (B2, num_features), jnp.float32)
    tgt2 = jax.random.normal(k4, (B2, num_features), jnp.float32)
    loss2, newC2 = dino_loss_forward(pred2, tgt2, C, tmp_s_arr, tmp_t_arr,
                                     epoch, C_mom, tm=8)
    loss2 = jax.block_until_ready(loss2)
    newC2 = jax.block_until_ready(newC2)
    ref_loss2, ref_C2 = _reference(pred2, tgt2, C, tmp_s_arr[epoch],
                                   tmp_t_arr[epoch], C_mom)
    assert jnp.allclose(loss2, ref_loss2, rtol=1e-5, atol=1e-5), (loss2, ref_loss2)
    assert jnp.allclose(newC2, ref_C2, rtol=1e-5, atol=1e-5), (newC2, ref_C2)

    print("KERNEL_OK")
</pallas_src>

<mosaic_0001>
module attributes {stable_mosaic.version = 11 : i64} {
  func.func @kernel(%arg0: i32, %arg1: memref<2xf32, #tpu.memory_space<smem>>, %arg2: memref<8x128xf32, #tpu.memory_space<vmem>>, %arg3: memref<8x128xf32, #tpu.memory_space<vmem>>, %arg4: memref<1x128xf32, #tpu.memory_space<vmem>>, %arg5: memref<1x1x1xf32, #tpu.memory_space<vmem>>, %arg6: memref<1x1x128xf32, #tpu.memory_space<vmem>>) attributes {dimension_semantics = [#tpu.dimension_semantics<parallel>], iteration_bounds = array<i64: 2>, scalar_prefetch = 0 : i64, scratch_operands = 0 : i64, tpu.core_type = #tpu.core_type<tc>, window_params = [{transform_indices = @transform_0, window_bounds = array<i64: 2>}, {transform_indices = @transform_1, window_bounds = array<i64: 8, 128>}, {transform_indices = @transform_2, window_bounds = array<i64: 8, 128>}, {pipeline_mode = #tpu.pipeline_mode<synchronous>, transform_indices = @transform_3, window_bounds = array<i64: 1, 128>}, {transform_indices = @transform_4, window_bounds = array<i64: 1, 1, 1>}, {transform_indices = @transform_5, window_bounds = array<i64: 1, 1, 128>}]} {
    %c0 = arith.constant 0 : index
    %0 = memref.load %arg1[%c0] : memref<2xf32, #tpu.memory_space<smem>>
    %c1 = arith.constant 1 : index
    %1 = memref.load %arg1[%c1] : memref<2xf32, #tpu.memory_space<smem>>
    %c0_0 = arith.constant 0 : index
    %c0_1 = arith.constant 0 : index
    %2 = vector.load %arg2[%c0_0, %c0_1] : memref<8x128xf32, #tpu.memory_space<vmem>>, vector<8x128xf32>
    %3 = vector.broadcast %0 : f32 to vector<8x128xf32>
    %4 = arith.mulf %2, %3 : vector<8x128xf32>
    %cst = arith.constant dense<0xFF800000> : vector<8xf32>
    %5 = vector.multi_reduction <maximumf>, %4, %cst [1] : vector<8x128xf32> to vector<8xf32>
    %6 = vector.shape_cast %5 : vector<8xf32> to vector<8x1xf32>
    %7 = vector.broadcast %6 : vector<8x1xf32> to vector<8x128xf32>
    %8 = arith.subf %4, %7 : vector<8x128xf32>
    %9 = math.exp %8 : vector<8x128xf32>
    %cst_2 = arith.constant dense<0.000000e+00> : vector<8xf32>
    %10 = vector.multi_reduction <add>, %9, %cst_2 [1] : vector<8x128xf32> to vector<8xf32>
    %11 = vector.shape_cast %10 : vector<8xf32> to vector<8x1xf32>
    %c0_3 = arith.constant 0 : index
    %c0_4 = arith.constant 0 : index
    %12 = vector.load %arg3[%c0_3, %c0_4] : memref<8x128xf32, #tpu.memory_space<vmem>>, vector<8x128xf32>
    %c0_5 = arith.constant 0 : index
    %c0_6 = arith.constant 0 : index
    %13 = vector.load %arg4[%c0_5, %c0_6] : memref<1x128xf32, #tpu.memory_space<vmem>>, vector<1x128xf32>
    %14 = vector.broadcast %13 : vector<1x128xf32> to vector<8x128xf32>
    %15 = arith.subf %12, %14 : vector<8x128xf32>
    %16 = vector.broadcast %1 : f32 to vector<8x128xf32>
    %17 = arith.mulf %15, %16 : vector<8x128xf32>
    %cst_7 = arith.constant dense<0xFF800000> : vector<8xf32>
    %18 = vector.multi_reduction <maximumf>, %17, %cst_7 [1] : vector<8x128xf32> to vector<8xf32>
    %19 = vector.shape_cast %18 : vector<8xf32> to vector<8x1xf32>
    %20 = vector.broadcast %19 : vector<8x1xf32> to vector<8x128xf32>
    %21 = arith.subf %17, %20 : vector<8x128xf32>
    %22 = math.exp %21 : vector<8x128xf32>
    %cst_8 = arith.constant dense<0.000000e+00> : vector<8xf32>
    %23 = vector.multi_reduction <add>, %22, %cst_8 [1] : vector<8x128xf32> to vector<8xf32>
    %24 = vector.shape_cast %23 : vector<8xf32> to vector<8x1xf32>
    %cst_9 = arith.constant 1.000000e+00 : f32
    %25 = vector.broadcast %cst_9 : f32 to vector<8x1xf32>
    %26 = arith.divf %25, %24 : vector<8x1xf32>
    %27 = arith.mulf %22, %8 : vector<8x128xf32>
    %cst_10 = arith.constant dense<0.000000e+00> : vector<8xf32>
    %28 = vector.multi_reduction <add>, %27, %cst_10 [1] : vector<8x128xf32> to vector<8xf32>
    %29 = vector.shape_cast %28 : vector<8xf32> to vector<8x1xf32>
    %30 = math.log %11 : vector<8x1xf32>
    %31 = arith.mulf %26, %29 : vector<8x1xf32>
    %32 = arith.subf %30, %31 : vector<8x1xf32>
    %33 = vector.broadcast %26 : vector<8x1xf32> to vector<8x128xf32>
    %34 = arith.mulf %22, %33 : vector<8x128xf32>
    %cst_11 = arith.constant dense<0.000000e+00> : vector<1xf32>
    %35 = vector.multi_reduction <add>, %32, %cst_11 [0] : vector<8x1xf32> to vector<1xf32>
    %36 = vector.shape_cast %35 : vector<1xf32> to vector<1x1xf32>
    %37 = vector.shape_cast %36 : vector<1x1xf32> to vector<1x1x1xf32>
    %c0_12 = arith.constant 0 : index
    %c0_13 = arith.constant 0 : index
    %c0_14 = arith.constant 0 : index
    %38 = vector.load %arg5[%c0_12, %c0_13, %c0_14] : memref<1x1x1xf32, #tpu.memory_space<vmem>>, vector<1x1x1xf32>
    tpu.vector_store %arg5[%c0_12, %c0_13, %c0_14], %37 {strides = array<i32>} : memref<1x1x1xf32, #tpu.memory_space<vmem>>, vector<1x1x1xf32>,
    %cst_15 = arith.constant dense<0.000000e+00> : vector<128xf32>
    %39 = vector.multi_reduction <add>, %34, %cst_15 [0] : vector<8x128xf32> to vector<128xf32>
    %40 = vector.shape_cast %39 : vector<128xf32> to vector<1x128xf32>
    %41 = vector.shape_cast %40 : vector<1x128xf32> to vector<1x1x128xf32>
    %c0_16 = arith.constant 0 : index
    %c0_17 = arith.constant 0 : index
    %c0_18 = arith.constant 0 : index
    %42 = vector.load %arg6[%c0_16, %c0_17, %c0_18] : memref<1x1x128xf32, #tpu.memory_space<vmem>>, vector<1x1x128xf32>
    tpu.vector_store %arg6[%c0_16, %c0_17, %c0_18], %41 {strides = array<i32>} : memref<1x1x128xf32, #tpu.memory_space<vmem>>, vector<1x1x128xf32>,
    return
  }
  func.func @transform_0(%arg0: i32) -> i32 {
    %c0_i32 = arith.constant 0 : i32
    %c0_i32_0 = arith.constant 0 : i32
    return %c0_i32 : i32
  }
  func.func @transform_1(%arg0: i32) -> (i32, i32) {
    %c0_i32 = arith.constant 0 : i32
    %c0_i32_0 = arith.constant 0 : i32
    return %arg0, %c0_i32 : i32, i32
  }
  func.func @transform_2(%arg0: i32) -> (i32, i32) {
    %c0_i32 = arith.constant 0 : i32
    %c0_i32_0 = arith.constant 0 : i32
    return %arg0, %c0_i32 : i32, i32
  }
  func.func @transform_3(%arg0: i32) -> (i32, i32) {
    %c0_i32 = arith.constant 0 : i32
    %c0_i32_0 = arith.constant 0 : i32
    %c0_i32_1 = arith.constant 0 : i32
    return %c0_i32, %c0_i32_0 : i32, i32
  }
  func.func @transform_4(%arg0: i32) -> (i32, i32, i32) {
    %c0_i32 = arith.constant 0 : i32
    %c0_i32_0 = arith.constant 0 : i32
    %c0_i32_1 = arith.constant 0 : i32
    return %arg0, %c0_i32, %c0_i32_0 : i32, i32, i32
  }
  func.func @transform_5(%arg0: i32) -> (i32, i32, i32) {
    %c0_i32 = arith.constant 0 : i32
    %c0_i32_0 = arith.constant 0 : i32
    %c0_i32_1 = arith.constant 0 : i32
    return %arg0, %c0_i32, %c0_i32_0 : i32, i32, i32
  }
}

</mosaic_0001>

<llo_original>
// kernel: tpu_custom_call.1
$region0: #{tpu_custom_call.1}
  #allocation0 [shape = 'u32[]', space=smem, size = 0x4, offset = 0x4, fixed_abs, tag = 'smem constant byte address 0x4 - core index']
  #allocation1 [shape = 'u32[72,128]{1,0:T(1,128)}', space=vmem, size = 0x9000, scoped, tag = 'internal scratch']
  %s0 = inlined_call_operand.hbm [shape: f32[2], index: 0, kind: input, shape index: {}]
  %s1 = inlined_call_operand.hbm [shape: f32[16,128], index: 1, kind: input, shape index: {}]
  %s2 = inlined_call_operand.hbm [shape: f32[16,128], index: 2, kind: input, shape index: {}]
  %s3 = inlined_call_operand.vmem [shape: f32[1,128], index: 3, kind: input, shape index: {}]
  %s4 = inlined_call_operand.vmem [shape: f32[2,1,1], index: 4, kind: output, shape index: {0}]
  %s5 = inlined_call_operand.hbm [shape: f32[2,1,128], index: 5, kind: output, shape index: {1}]
  %6 = xla_tuple %s4, %s5
  %s7 = sld [smem:[#allocation0]]
  $region69: #{tpu_custom_call.1} parent=0
    _
  %s9 = ssub.s32 1, %s7
  %s10 = scalar_select 0, %s9, %s7
  $region1: #{tpu_custom_call.1} parent=0
    #allocation2 [shape = 'u8[512]{0}', space=smem, size = 0x200, scoped, tag = 'input window, operand 0, single buffered']
    #allocation3 [shape = 's32[2]{0}', space=sflag, size = 0x8, scoped, tag = 'scoped memory for tpu_custom_call.1']
    #allocation4 [shape = 's32[2]{0}', space=sflag, size = 0x8, scoped, tag = 'scoped memory for tpu_custom_call.1']
    #allocation5 [shape = 's32[2]{0}', space=sflag, size = 0x8, scoped, tag = 'scoped memory for tpu_custom_call.1']
    #allocation6 [shape = 'u8[8192]{0}', space=vmem, size = 0x2000, scoped, tag = 'input window, operand 1']
    #allocation7 [shape = 'u8[8192]{0}', space=vmem, size = 0x2000, scoped, tag = 'input window, operand 2']
    #allocation8 [shape = 's32[2]{0}', space=sflag, size = 0x8, scoped, tag = 'scoped memory for tpu_custom_call.1']
    #allocation9 [shape = 'u8[1024]{0}', space=vmem, size = 0x400, scoped, tag = 'output window, operand 1']
    %11 = vsyncpa [#allocation5], 0
    %12 = vsyncpa [#allocation3], 0
    %s13 = scalar_lea.sflag [#allocation3], 1
    %14 = vsyncpa %s13, 0
    %15 = vsyncpa [#allocation8], 0
    %s16 = scalar_lea.sflag [#allocation8], 1
    %17 = vsyncpa %s16, 0
    %18 = vsyncpa [#allocation4], 0
    %s19 = scalar_lea.sflag [#allocation4], 1
    %20 = vsyncpa %s19, 0
    loop: start=0, step=1, limit=4
    $region2: #{tpu_custom_call.1} parent=1 // loop_pre_header
      _
    $region3: #{tpu_custom_call.1} parent=1 // loop_header
      %s22 = sphi 0, %s26
      %p23 = scmp.ge.s32.totalorder %s22, 4
      %s30 = sphi 0, %s30
      %s32 = sphi 0, %s30
      %s33 = sphi 0, %s32
      %s47 = sphi 0, %s33
      %s53 = sphi 0, %s55
      %s56 = sphi 0, %s53
      %s57 = sphi 0, %s56
      %s73 = sphi 0, %s57
      %s79 = sphi 0, %s81
      %s82 = sphi 0, %s79
      %s83 = sphi 0, %s82
      %s99 = sphi 0, %s83
      %s103 = sphi 0, %s103
      %s105 = sphi 0, %s103
      %s106 = sphi 0, %s105
      %s120 = sphi 0, %s106
      %s126 = sphi 0, %s128
      %s129 = sphi 0, %s126
      %s130 = sphi 0, %s129
      %s146 = sphi 0, %s130
      %s152 = sphi 0, %s154
      %s155 = sphi 0, %s152
      %s156 = sphi 0, %s155
      %s172 = sphi 0, %s156
    $region4: #{tpu_custom_call.1} parent=1 // loop_header_branch
      %25 = sbr.rel (%p23) target = $region8
    $region5: #{tpu_custom_call.1} parent=1 // loop_body
      %s27 = ssub.s32 %s22, 1
      %s28 = ssub.s32 %s22, 2
      %s29 = sadd.s32 %s22, 1
      %s31 = sadd.s32 %s30, 1
      %p34 = scmp.eq.s32.totalorder %s22, 1
      %p35 = scmp.ne.s32.totalorder %s30, %s32
      %p36 = scmp.eq.s32.totalorder %s22, 0
      %p37 = por %p35, %p36
      %p38 = scmp.ne.s32.totalorder %s30, %s32
      %p39 = scmp.eq.s32.totalorder %s27, 1
      %p40 = por %p38, %p39
      %p41 = scmp.ne.s32.totalorder %s32, %s33
      %p42 = scmp.eq.s32.totalorder %s27, 0
      %p43 = por %p41, %p42
      %p44 = scmp.ne.s32.totalorder %s32, %s33
      %p45 = scmp.eq.s32.totalorder %s28, 1
      %p46 = por %p44, %p45
      %p48 = scmp.ne.s32.totalorder %s33, %s47
      %p49 = scmp.eq.s32.totalorder %s28, 0
      %p50 = por %p48, %p49
      %s51 = ssub.s32 %s22, %s29
      %p52 = scmp.eq.s32.totalorder %s51, 0
      %s54 = sadd.s32 %s53, 1
      %s55 = scalar_select %p52, %s53, %s54
      %p58 = pneg %p52
      %p59 = scmp.eq.s32.totalorder %s22, 1
      %p60 = por %p58, %p59
      %p61 = scmp.ne.s32.totalorder %s53, %s56
      %p62 = scmp.eq.s32.totalorder %s22, 0
      %p63 = por %p61, %p62
      %p64 = scmp.ne.s32.totalorder %s53, %s56
      %p65 = scmp.eq.s32.totalorder %s27, 1
      %p66 = por %p64, %p65
      %p67 = scmp.ne.s32.totalorder %s56, %s57
      %p68 = scmp.eq.s32.totalorder %s27, 0
      %p69 = por %p67, %p68
      %p70 = scmp.ne.s32.totalorder %s56, %s57
      %p71 = scmp.eq.s32.totalorder %s28, 1
      %p72 = por %p70, %p71
      %p74 = scmp.ne.s32.totalorder %s57, %s73
      %p75 = scmp.eq.s32.totalorder %s28, 0
      %p76 = por %p74, %p75
      %s77 = ssub.s32 %s22, %s29
      %p78 = scmp.eq.s32.totalorder %s77, 0
      %s80 = sadd.s32 %s79, 1
      %s81 = scalar_select %p78, %s79, %s80
      %p84 = pneg %p78
      %p85 = scmp.eq.s32.totalorder %s22, 1
      %p86 = por %p84, %p85
      %p87 = scmp.ne.s32.totalorder %s79, %s82
      %p88 = scmp.eq.s32.totalorder %s22, 0
      %p89 = por %p87, %p88
      %p90 = scmp.ne.s32.totalorder %s79, %s82
      %p91 = scmp.eq.s32.totalorder %s27, 1
      %p92 = por %p90, %p91
      %p93 = scmp.ne.s32.totalorder %s82, %s83
      %p94 = scmp.eq.s32.totalorder %s27, 0
      %p95 = por %p93, %p94
      %p96 = scmp.ne.s32.totalorder %s82, %s83
      %p97 = scmp.eq.s32.totalorder %s28, 1
      %p98 = por %p96, %p97
      %p100 = scmp.ne.s32.totalorder %s83, %s99
      %p101 = scmp.eq.s32.totalorder %s28, 0
      %p102 = por %p100, %p101
      %s104 = sadd.s32 %s103, 1
      %p107 = scmp.eq.s32.totalorder %s22, 1
      %p108 = scmp.ne.s32.totalorder %s103, %s105
      %p109 = scmp.eq.s32.totalorder %s22, 0
      %p110 = por %p108, %p109
      %p111 = scmp.ne.s32.totalorder %s103, %s105
      %p112 = scmp.eq.s32.totalorder %s27, 1
      %p113 = por %p111, %p112
      %p114 = scmp.ne.s32.totalorder %s105, %s106
      %p115 = scmp.eq.s32.totalorder %s27, 0
      %p116 = por %p114, %p115
      %p117 = scmp.ne.s32.totalorder %s105, %s106
      %p118 = scmp.eq.s32.totalorder %s28, 1
      %p119 = por %p117, %p118
      %p121 = scmp.ne.s32.totalorder %s106, %s120
      %p122 = scmp.eq.s32.totalorder %s28, 0
      %p123 = por %p121, %p122
      %s124 = ssub.s32 %s22, %s29
      %p125 = scmp.eq.s32.totalorder %s124, 0
      %s127 = sadd.s32 %s126, 1
      %s128 = scalar_select %p125, %s126, %s127
      %p131 = pneg %p125
      %p132 = scmp.eq.s32.totalorder %s22, 1
      %p133 = por %p131, %p132
      %p134 = scmp.ne.s32.totalorder %s126, %s129
      %p135 = scmp.eq.s32.totalorder %s22, 0
      %p136 = por %p134, %p135
      %p137 = scmp.ne.s32.totalorder %s126, %s129
      %p138 = scmp.eq.s32.totalorder %s27, 1
      %p139 = por %p137, %p138
      %p140 = scmp.ne.s32.totalorder %s129, %s130
      %p141 = scmp.eq.s32.totalorder %s27, 0
      %p142 = por %p140, %p141
      %p143 = scmp.ne.s32.totalorder %s129, %s130
      %p144 = scmp.eq.s32.totalorder %s28, 1
      %p145 = por %p143, %p144
      %p147 = scmp.ne.s32.totalorder %s130, %s146
      %p148 = scmp.eq.s32.totalorder %s28, 0
      %p149 = por %p147, %p148
      %s150 = ssub.s32 %s22, %s29
      %p151 = scmp.eq.s32.totalorder %s150, 0
      %s153 = sadd.s32 %s152, 1
      %s154 = scalar_select %p151, %s152, %s153
      %p157 = pneg %p151
      %p158 = scmp.eq.s32.totalorder %s22, 1
      %p159 = por %p157, %p158
      %p160 = scmp.ne.s32.totalorder %s152, %s155
      %p161 = scmp.eq.s32.totalorder %s22, 0
      %p162 = por %p160, %p161
      %p163 = scmp.ne.s32.totalorder %s152, %s155
      %p164 = scmp.eq.s32.totalorder %s27, 1
      %p165 = por %p163, %p164
      %p166 = scmp.ne.s32.totalorder %s155, %s156
      %p167 = scmp.eq.s32.totalorder %s27, 0
      %p168 = por %p166, %p167
      %p169 = scmp.ne.s32.totalorder %s155, %s156
      %p170 = scmp.eq.s32.totalorder %s28, 1
      %p171 = por %p169, %p170
      %p173 = scmp.ne.s32.totalorder %s156, %s172
      %p174 = scmp.eq.s32.totalorder %s28, 0
      %p175 = por %p173, %p174
      %p176 = scmp.le.s32.totalorder 1, %s22
      %p177 = scmp.lt.s32.totalorder %s22, 3
      %p178 = pnand %p176, %p177
      %p179 = pneg %p178
      // Predicated region
      $region9: #{tpu_custom_call.1} parent=5 // pred_check
        _
      $region10: #{tpu_custom_call.1} parent=5 // pred_check_branch
        %181 = sbr.rel (%p178) target = $region12
      $region11: #{tpu_custom_call.1} parent=5 // pred_region
        %s182 = ssub.s32 %s22, 1
        // Predicated region
        $region13: #{tpu_custom_call.1} parent=11 // pred_check
          %p183 = pneg %p43
        $region14: #{tpu_custom_call.1} parent=11 // pred_check_branch
          %185 = sbr.rel (%p183) target = $region16
        $region15: #{tpu_custom_call.1} parent=11 // pred_region
          %187 = vsyncadd [#allocation5], 0
          %s189 = sshll.u32 %s0, 4
          %s190 = int_to_ptr.hbm [resolvable:$true] %s189
          %192 = dma.hbm_to_smem %s190, 16, [#allocation2], [#allocation5]
        $region16: #{tpu_custom_call.1} parent=11 // pred_fallthru
          _
        // Predicated region
        $region17: #{tpu_custom_call.1} parent=11 // pred_check
          %p193 = pneg %p116
        $region18: #{tpu_custom_call.1} parent=11 // pred_check_branch
          %195 = sbr.rel (%p193) target = $region20
        $region19: #{tpu_custom_call.1} parent=11 // pred_region
          _
        $region20: #{tpu_custom_call.1} parent=11 // pred_fallthru
          _
      $region12: #{tpu_custom_call.1} parent=5 // pred_fallthru
        _
      %p196 = scmp.lt.s32.totalorder %s22, 2
      // Predicated region
      $region21: #{tpu_custom_call.1} parent=5 // pred_check
        %p197 = pneg %p196
      $region22: #{tpu_custom_call.1} parent=5 // pred_check_branch
        %199 = sbr.rel (%p197) target = $region24
      $region23: #{tpu_custom_call.1} parent=5 // pred_region
        // Predicated region
        $region25: #{tpu_custom_call.1} parent=23 // pred_check
          %p200 = pneg %p63
        $region26: #{tpu_custom_call.1} parent=23 // pred_check_branch
          %202 = sbr.rel (%p200) target = $region28
        $region27: #{tpu_custom_call.1} parent=23 // pred_region
          %s203 = sand.u32 %s53, 1
          %s204 = scalar_lea.sflag [#allocation3], %s203
          %s205 = sand.u32 %s53, 1
          %s206 = smul.addr %s205, 8
          %s207 = scalar_lea.vmem [#allocation6], %s206
          %209 = vsyncadd %s204, 0
          %s210 = smul.addr %s22, 8
          %s211 = scalar_lea.hbm %s1, %s210
          %s213 = sshll.u32 %s211, 4
          %s214 = int_to_ptr.hbm [resolvable:$true] %s213
          %s215 = sshll.u32 %s207, 4
          %s216 = int_to_ptr.vmem [resolvable:$true] %s215
          %218 = dma.hbm_to_vmem [thread:$0]  %s214, 128, %s216, %s204
        $region28: #{tpu_custom_call.1} parent=23 // pred_fallthru
          _
        // Predicated region
        $region29: #{tpu_custom_call.1} parent=23 // pred_check
          %p219 = pneg %p89
        $region30: #{tpu_custom_call.1} parent=23 // pred_check_branch
          %221 = sbr.rel (%p219) target = $region32
        $region31: #{tpu_custom_call.1} parent=23 // pred_region
          %s222 = sand.u32 %s79, 1
          %s223 = scalar_lea.sflag [#allocation8], %s222
          %s224 = sand.u32 %s79, 1
          %s225 = smul.addr %s224, 8
          %s226 = scalar_lea.vmem [#allocation7], %s225
          %228 = vsyncadd %s223, 0
          %s229 = smul.addr %s22, 8
          %s230 = scalar_lea.hbm %s2, %s229
          %s232 = sshll.u32 %s230, 4
          %s233 = int_to_ptr.hbm [resolvable:$true] %s232
          %s234 = sshll.u32 %s226, 4
          %s235 = int_to_ptr.vmem [resolvable:$true] %s234
          %237 = dma.hbm_to_vmem [thread:$0]  %s233, 128, %s235, %s223
        $region32: #{tpu_custom_call.1} parent=23 // pred_fallthru
          _
      $region24: #{tpu_custom_call.1} parent=5 // pred_fallthru
        _
      %p238 = scmp.le.s32.totalorder 1, %s22
      %p239 = scmp.lt.s32.totalorder %s22, 3
      %p240 = pnand %p238, %p239
      %p241 = pneg %p240
      // Predicated region
      $region33: #{tpu_custom_call.1} parent=5 // pred_check
        _
      $region34: #{tpu_custom_call.1} parent=5 // pred_check_branch
        %243 = sbr.rel (%p240) target = $region36
      $region35: #{tpu_custom_call.1} parent=5 // pred_region
        %s244 = ssub.s32 %s22, 1
        // Predicated region
        $region37: #{tpu_custom_call.1} parent=35 // pred_check
          %p245 = pneg %p43
        $region38: #{tpu_custom_call.1} parent=35 // pred_check_branch
          %247 = sbr.rel (%p245) target = $region40
        $region39: #{tpu_custom_call.1} parent=35 // pred_region
          %249 = dma.done [#allocation5], 16
        $region40: #{tpu_custom_call.1} parent=35 // pred_fallthru
          _
        %s250 = sand.u32 %s56, 1
        %s251 = scalar_lea.sflag [#allocation3], %s250
        %s252 = sand.u32 %s56, 1
        %s253 = smul.addr %s252, 8
        %s254 = scalar_lea.vmem [#allocation6], %s253
        // Predicated region
        $region41: #{tpu_custom_call.1} parent=35 // pred_check
          %p255 = pneg %p69
        $region42: #{tpu_custom_call.1} parent=35 // pred_check_branch
          %257 = sbr.rel (%p255) target = $region44
        $region43: #{tpu_custom_call.1} parent=35 // pred_region
          %259 = dma.done %s251, 128
        $region44: #{tpu_custom_call.1} parent=35 // pred_fallthru
          _
        %s260 = sand.u32 %s82, 1
        %s261 = scalar_lea.sflag [#allocation8], %s260
        %s262 = sand.u32 %s82, 1
        %s263 = smul.addr %s262, 8
        %s264 = scalar_lea.vmem [#allocation7], %s263
        // Predicated region
        $region45: #{tpu_custom_call.1} parent=35 // pred_check
          %p265 = pneg %p95
        $region46: #{tpu_custom_call.1} parent=35 // pred_check_branch
          %267 = sbr.rel (%p265) target = $region48
        $region47: #{tpu_custom_call.1} parent=35 // pred_region
          %269 = dma.done %s261, 128
        $region48: #{tpu_custom_call.1} parent=35 // pred_fallthru
          _
        %270 = sfence
        %p271 = pneg %p43
        %p272 = pneg %p40
        %s273 = sand.u32 %s56, 1
        %s274 = scalar_lea.sflag [#allocation3], %s273
        %s275 = sand.u32 %s56, 1
        %s276 = smul.addr %s275, 8
        %s277 = scalar_lea.vmem [#allocation6], %s276
        %p278 = pneg %p69
        %p279 = pneg %p66
        %s280 = sand.u32 %s82, 1
        %s281 = scalar_lea.sflag [#allocation8], %s280
        %s282 = sand.u32 %s82, 1
        %s283 = smul.addr %s282, 8
        %s284 = scalar_lea.vmem [#allocation7], %s283
        %p285 = pneg %p95
        %p286 = pneg %p92
        %p287 = pneg %p116
        %p288 = pneg %p113
        %p289 = pneg %p142
        %p290 = pneg %p139
        %p291 = scmp.lt.s32.totalorder %s27, 1
        %s292 = scalar_select %p291, %s27, 1
        %s293 = scalar_lea.vmem %s4, %s292
        %p294 = pneg %p168
        %p295 = pneg %p165
        %s296 = sand.u32 %s155, 1
        %s297 = scalar_lea.sflag [#allocation4], %s296
        %s298 = sand.u32 %s155, 1
        %s299 = scalar_lea.vmem [#allocation9], %s298
        %p300 = scmp.lt.s32.totalorder %s27, 1
        %s301 = scalar_select %p300, %s27, 1
        %s302 = scalar_lea.vmem %s4, %s301
        %s303 = sld [smem:[#allocation2]]
        %s304 = sld [smem:[#allocation2 + $0x1]]
        %v305 = vld [vmem:[%s254] sm:$0xff]
        %v306 = vstv %s303
        %v307 = vmul.f32 %v305, %v306
        %308 = vmax.xlane.f32.xlu0 %v307
        %v309 = vpop.xlane.xlu0 %308
        %v310 = vsub.f32 %v307, %v309
        %v311 = vmul.f32 %v310, 1.442695
        %v312 = vpow.pop %v311
        %313 = vadd.xlane.f32.xlu0 %v312
        %v314 = vpop.xlane.xlu0 %313
        %v315 = vld [vmem:[%s264] sm:$0xff]
        %v316 = vld [vmem:[%s3] sm:$0x1]
        %v318 = vperm.slane %v316, 0
        %v320 = vsub.f32 %v315, %v318
        %v321 = vstv %s304
        %v322 = vmul.f32 %v320, %v321
        %323 = vmax.xlane.f32.xlu0 %v322
        %v324 = vpop.xlane.xlu0 %323
        %v325 = vsub.f32 %v322, %v324
        %v326 = vmul.f32 %v325, 1.442695
        %v327 = vpow.pop %v326
        %328 = vadd.xlane.f32.xlu0 %v327
        %v329 = vpop.xlane.xlu0 %328
        %v330 = vrcp.pop %v329
        %v331 = vmul.f32 %v329, %v330
        %v332 = vsub.f32 1.0, %v331
        %v333 = vmul.f32 %v330, %v332
        %v334 = vadd.f32 %v330, %v333
        %vm335 = vweird.f32 %v329
        %vm336 = vweird.f32 %v330
        %vm337 = vmor %vm335, %vm336
        %v338 = vsel %vm337, %v330, %v334
        %v339 = vand.u32 2147483647, %v329
        %vm340 = vcmp.eq.f32.partialorder %v339, 8.507059e+37
        %v341 = vand.u32 %v329, 2147483648
        %v342 = vor.u32 1.1754944e-38, %v341
        %v343 = vsel %vm340, %v342, %v338
        %v344 = vmul.f32 1.0, %v343
        %v345 = vmul.f32 %v327, %v310
        %346 = vadd.xlane.f32.xlu0 %v345
        %v347 = vpop.xlane.xlu0 %346
        %v348 = vlog2.pop %v314
        %v349 = vmul.f32 %v348, 0.6931472
        %v350 = vmul.f32 %v344, %v347
        %v351 = vsub.f32 %v349, %v350
        %v352 = vmul.f32 %v327, %v344
        %v353 = vrot.slane %v351, 4
        %v354 = vadd.f32 %v351, %v353
        %v355 = vrot.slane %v354, 2
        %v356 = vadd.f32 %v354, %v355
        %v357 = vrot.slane %v356, 1
        %v358 = vadd.f32 %v356, %v357
        %vm359 = vcmask 0
        %360 = vst.msk [vmem:[%s302] sm:$0x1] %vm359, %v358
        %v361 = vrot.slane %v352, 4
        %v362 = vadd.f32 %v352, %v361
        %v363 = vrot.slane %v362, 2
        %v364 = vadd.f32 %v362, %v363
        %v365 = vrot.slane %v364, 1
        %v366 = vadd.f32 %v364, %v365
        %367 = vst [vmem:[%s299] sm:$0x1] %v366
        %p368 = scmp.lt.s32.totalorder %s27, 1
        %s369 = scalar_select %p368, %s27, 1
        %s370 = scalar_lea.vmem %s4, %s369
        %s371 = sand.u32 %s155, 1
        %s372 = scalar_lea.sflag [#allocation4], %s371
        %s373 = sand.u32 %s155, 1
        %s374 = scalar_lea.vmem [#allocation9], %s373
        // Predicated region
        $region49: #{tpu_custom_call.1} parent=35 // pred_check
          %p375 = pneg %p139
        $region50: #{tpu_custom_call.1} parent=35 // pred_check_branch
          %377 = sbr.rel (%p375) target = $region52
        $region51: #{tpu_custom_call.1} parent=35 // pred_region
          _
        $region52: #{tpu_custom_call.1} parent=35 // pred_fallthru
          _
        // Predicated region
        $region53: #{tpu_custom_call.1} parent=35 // pred_check
          %p378 = pneg %p165
        $region54: #{tpu_custom_call.1} parent=35 // pred_check_branch
          %380 = sbr.rel (%p378) target = $region56
        $region55: #{tpu_custom_call.1} parent=35 // pred_region
          %382 = vsyncadd %s372, 0
          %s383 = scalar_lea.hbm %s5, %s27
          %s385 = sshll.u32 %s374, 4
          %s386 = int_to_ptr.vmem [resolvable:$true] %s385
          %s387 = sshll.u32 %s383, 4
          %s388 = int_to_ptr.hbm [resolvable:$true] %s387
          %390 = dma.vmem_to_hbm [thread:$0]  %s386, 16, %s388, %s372
        $region56: #{tpu_custom_call.1} parent=35 // pred_fallthru
          _
      $region36: #{tpu_custom_call.1} parent=5 // pred_fallthru
        _
      %p391 = scmp.le.s32.totalorder 2, %s22
      // Predicated region
      $region57: #{tpu_custom_call.1} parent=5 // pred_check
        %p392 = pneg %p391
      $region58: #{tpu_custom_call.1} parent=5 // pred_check_branch
        %394 = sbr.rel (%p392) target = $region60
      $region59: #{tpu_custom_call.1} parent=5 // pred_region
        %s395 = ssub.s32 %s22, 2
        // Predicated region
        $region61: #{tpu_custom_call.1} parent=59 // pred_check
          %p396 = pneg %p145
        $region62: #{tpu_custom_call.1} parent=59 // pred_check_branch
          %398 = sbr.rel (%p396) target = $region64
        $region63: #{tpu_custom_call.1} parent=59 // pred_region
          %p399 = scmp.lt.s32.totalorder %s28, 1
          %s400 = scalar_select %p399, %s28, 1
          %s401 = scalar_lea.vmem %s4, %s400
        $region64: #{tpu_custom_call.1} parent=59 // pred_fallthru
          _
        // Predicated region
        $region65: #{tpu_custom_call.1} parent=59 // pred_check
          %p402 = pneg %p171
        $region66: #{tpu_custom_call.1} parent=59 // pred_check_branch
          %404 = sbr.rel (%p402) target = $region68
        $region67: #{tpu_custom_call.1} parent=59 // pred_region
          %s405 = sand.u32 %s156, 1
          %s406 = scalar_lea.sflag [#allocation4], %s405
          %s407 = sand.u32 %s156, 1
          %s408 = scalar_lea.vmem [#allocation9], %s407
          %410 = dma.done %s406, 16
        $region68: #{tpu_custom_call.1} parent=59 // pred_fallthru
          _
      $region60: #{tpu_custom_call.1} parent=5 // pred_fallthru
        _
    $region6: #{tpu_custom_call.1} parent=1 // loop_footer
      %s26 = sadd.s32 1, %s22
    $region7: #{tpu_custom_call.1} parent=1 // loop_footer_branch
      %21 = sbr.rel target = $region3
    $region8: #{tpu_custom_call.1} parent=1 // loop_exit
      _
    %411 = vsyncpa [#allocation3], 1
    %s412 = scalar_lea.sflag [#allocation3], 1
    %413 = vsyncpa %s412, 1
    %414 = vsyncpa [#allocation8], 1
    %s415 = scalar_lea.sflag [#allocation8], 1
    %416 = vsyncpa %s415, 1
    %417 = vsyncpa [#allocation4], 1
    %s418 = scalar_lea.sflag [#allocation4], 1
    %419 = vsyncpa %s418, 1
    %420 = vsyncpa [#allocation5], 1
    %s421 = scalar_lea.sflag [#allocation5], 1
    %422 = vsyncpa %s421, 1

</llo_original>
